<compile_context>
chip_gen: v7x
topology: tpu7x:2x2x1
jax: 0.10.0
libtpu: 0.0.40
codegen_flags: <defaults>
</compile_context>

<pallas_src>
import inspect

import jax
import jax.numpy as jnp
from jax.experimental import pallas as pl
from jax.experimental.pallas import tpu as pltpu

LEAKY = 0.02
BN_EPS = 1e-5
MATMUL_DTYPE = jnp.bfloat16   # dtype fed to the MXU (f32 accumulation everywhere)
ACT_DTYPE = jnp.bfloat16      # dtype of activations stored in HBM / VMEM feature scratch

try:
    _SINGLE_BUFFER_OK = (hasattr(pl, "Buffered")
                         and "pipeline_mode" in inspect.signature(pl.BlockSpec).parameters)
except Exception:  # pragma: no cover - conservative fallback
    _SINGLE_BUFFER_OK = False


def _leaky_relu(x, slope):
    return jnp.where(x > 0, x, slope * x)


# ---------------- Fused dense-block kernel ----------------------------------------------


def _make_block_kernel(*, num_layers, has_stem, has_layer_scale, has_trans_scale, tail,
                       leaky, seq, batch_tile, base, growth, c_final):
    """One fused DenseNet block:
       [stem conv0 + folded BN + leaky]? -> num_layers x (conv3 + leaky + BN, append into a
       resident bf16 feature scratch) -> (transition: 1x1 conv + leaky + BN + avgpool2) |
       (head: pool + fc1/fc2/classifier)."""
    rows = batch_tile * seq

    def kernel(*refs):
        refs = list(refs)
        x_ref = refs.pop(0)
        if has_stem:
            stem_w_ref = refs.pop(0)                  # (3, E, C0) bf16, norm0 scale folded
            stem_b_ref = refs.pop(0)                  # (1, C0) f32
        layer_w_refs = [refs.pop(0) for _ in range(num_layers)]   # (3, Cin_j, G) bf16
        bias_ref = refs.pop(0)                        # (L, G) f32
        scale_ref = refs.pop(0) if has_layer_scale else None
        if tail == "transition":
            tw_ref = refs.pop(0)                      # (c_final, ct) bf16 (0.5*BN folded)
            ts_ref = refs.pop(0) if has_trans_scale else None
            tb_ref = refs.pop(0)                      # (1, ct) f32
            o_ref = refs.pop(0)
        else:
            (w1_ref, b1_ref, w2_ref, b2_ref, w3_ref, b3_ref, o_ref) = [
                refs.pop(0) for _ in range(7)]
        feats_ref = refs.pop(0)                       # VMEM scratch (rows, c_final) bf16

        # Per-sample sequence-boundary masks, generated in-kernel (no HBM inputs / DMAs).
        srow = jax.lax.broadcasted_iota(jnp.int32, (rows, 1), 0) % seq
        keep_prev = srow != 0
        keep_next = srow != (seq - 1)

        def conv3(src, w_ref):
            # k=3 "same" conv (padding=1) as three K=C matmuls on the UNSHIFTED source;
            # only the small (rows, Cout) tap outputs are rolled (XLU) and boundary-masked.
            p = jnp.dot(src, w_ref[0], preferred_element_type=jnp.float32)  # tap s-1
            m = jnp.dot(src, w_ref[1], preferred_element_type=jnp.float32)  # tap s
            n = jnp.dot(src, w_ref[2], preferred_element_type=jnp.float32)  # tap s+1
            p = jnp.where(keep_prev, pltpu.roll(p, 1, axis=0), 0.0)
            n = jnp.where(keep_next, pltpu.roll(n, rows - 1, axis=0), 0.0)
            return m + p + n

        if has_stem:
            # conv0 (norm0 scale folded into the weights) -> +bias -> relu0
            y0 = _leaky_relu(conv3(x_ref[...], stem_w_ref) + stem_b_ref[...], leaky)
            feats_ref[:, :base] = y0.astype(feats_ref.dtype)
        else:
            feats_ref[:, :base] = x_ref[...]

        biases = bias_ref[...]                        # (L, G) f32, loaded once
        scales = scale_ref[...] if has_layer_scale else None
        for j in range(num_layers):
            # fastai conv_layer: conv3 -> leaky relu -> BN (scale folded into the conv
            # weights when strictly positive).  dropMergeLayer: eval-mode dropout is
            # identity; the new channels are APPENDED into the resident feature scratch
            # (weights were pre-permuted from torch's newest-first concat order).
            # TODO(synk): training-mode dropout / batch-stat BatchNorm not implemented.
            c_in = base + j * growth
            y = _leaky_relu(conv3(feats_ref[:, :c_in], layer_w_refs[j]), leaky)
            if scales is not None:
                y = y * scales[j:j + 1]
            y = y + biases[j:j + 1]
            feats_ref[:, c_in:c_in + growth] = y.astype(feats_ref.dtype)

        if tail == "transition":
            # _Transition: 1x1 conv -> leaky -> BN -> AvgPool1d(2,2).  BN scale and the 0.5
            # pool factor are folded into the conv weights host-side, so the pool is a
            # plain pairwise sum on the value (no full-size scratch round-trip / re-read).
            ct = tw_ref.shape[-1]
            t = _leaky_relu(jnp.dot(feats_ref[...], tw_ref[...],
                                    preferred_element_type=jnp.float32), leaky)
            pooled = jnp.sum(t.reshape(rows // 2, 2, ct), axis=1)
            if ts_ref is not None:
                pooled = pooled * ts_ref[...]
            o_ref[...] = (pooled + tb_ref[...]).astype(o_ref.dtype)
        else:
            # Head: leaky -> adaptive avg/max pool over S (vectorized over the batch tile)
            # -> cat([avg, max]) -> fc1 -> leaky -> fc2 -> leaky -> classifier.
            h = _leaky_relu(feats_ref[...].astype(jnp.float32), leaky)
            h = h.reshape(batch_tile, seq, c_final)
            z = jnp.concatenate([jnp.mean(h, axis=1), jnp.max(h, axis=1)], axis=-1)
            z = _leaky_relu(jnp.dot(z.astype(MATMUL_DTYPE), w1_ref[...],
                                    preferred_element_type=jnp.float32) + b1_ref[...], leaky)
            z = _leaky_relu(jnp.dot(z.astype(MATMUL_DTYPE), w2_ref[...],
                                    preferred_element_type=jnp.float32) + b2_ref[...], leaky)
            z = (jnp.dot(z.astype(MATMUL_DTYPE), w3_ref[...],
                         preferred_element_type=jnp.float32) + b3_ref[...])
            o_ref[...] = z.astype(o_ref.dtype)

    return kernel


# ---------------- Tiling / VMEM budgeting -------------------------------------------------


def _vmem_capacity_bytes():
    try:
        return int(pltpu.get_tpu_info().vmem_capacity_bytes)
    except Exception:
        return 64 * 1024 * 1024          # conservative: v7x per-TensorCore VMEM


def _pick_batch_tile(batch, seq, est_bytes, budget, *, head):
    """Largest batch tile whose VMEM estimate fits the budget, preferring a grid of >= 2
    steps so the 'parallel' batch axis can shard across both TensorCores on v7x, while
    keeping bf16 block rows aligned ((t*seq) % 16 == 0, or the full batch)."""
    def aligned(t):
        if head and not (t == batch or t % 8 == 0):
            return False                  # head output block rows must be 8-aligned or full
        return t == batch or (t * seq) % 16 == 0

    divisors = [t for t in range(1, batch + 1) if batch % t == 0]
    cands = [t for t in divisors if aligned(t) and est_bytes(t) <= budget]
    if not cands:
        cands = [t for t in divisors if aligned(t)] or [batch]
    multi = [t for t in cands if batch // t >= 2]
    return max(multi) if multi else max(cands)


def _const_spec(arr):
    """Whole-array BlockSpec for grid-invariant weights; single-buffered when supported
    (they are never re-fetched across grid steps, so one VMEM copy suffices)."""
    kwargs = {}
    if _SINGLE_BUFFER_OK:
        kwargs["pipeline_mode"] = pl.Buffered(1)
    return pl.BlockSpec(arr.shape, lambda b, _nd=arr.ndim: (0,) * _nd, **kwargs)


# ---------------- Fused block wrapper ------------------------------------------------------


def fused_block(x, blk, *, batch, seq, leaky, has_stem, tail):
    """Run one fused DenseNet block over the whole flattened batch (grid over batch tiles)."""
    rows_total, cin = x.shape
    assert rows_total == batch * seq
    num_layers = len(blk["layer_w"])
    growth = blk["layer_w"][0].shape[-1]
    base = blk["stem_w"].shape[-1] if has_stem else cin
    c_final = base + num_layers * growth
    has_layer_scale = blk.get("scale") is not None
    has_trans_scale = tail == "transition" and blk.get("trans_scale") is not None

    weights = []
    if has_stem:
        weights += [blk["stem_w"], blk["stem_b"]]
    weights += list(blk["layer_w"])
    weights += [blk["bias"]]
    if has_layer_scale:
        weights += [blk["scale"]]
    if tail == "transition":
        assert seq % 2 == 0, "AvgPool1d(2,2) requires an even sequence length"
        ct = blk["trans_w"].shape[-1]
        weights += [blk["trans_w"]]
        if has_trans_scale:
            weights += [blk["trans_scale"]]
        weights += [blk["trans_bias"]]
    else:
        nc = blk["cls_w"].shape[-1]
        weights += [blk["fc1_w"], blk["fc1_b"], blk["fc2_w"], blk["fc2_b"],
                    blk["cls_w"], blk["cls_b"]]

    weight_bytes = sum(int(a.size) * a.dtype.itemsize for a in weights)

    def est_bytes(t):
        rows = t * seq
        b = weight_bytes                               # single-buffered weights
        b += 2 * rows * cin * x.dtype.itemsize         # input tile (double-buffered)
        b += rows * c_final * 2                        # bf16 feature scratch
        if tail == "transition":
            b += 2 * (rows // 2) * ct * 2              # output tile (double-buffered bf16)
            widest = max(c_final, ct)
        else:
            b += 2 * t * nc * 4                        # output tile (f32)
            widest = max(c_final, blk["fc1_w"].shape[-1])
        b += 4 * rows * widest * 4                     # f32 temporaries headroom
        return b

    vmem_cap = _vmem_capacity_bytes()
    batch_tile = _pick_batch_tile(batch, seq, est_bytes, int(0.4 * vmem_cap),
                                  head=(tail == "head"))
    rows = batch_tile * seq

    inputs = [x] + weights
    in_specs = [pl.BlockSpec((rows, cin), lambda b: (b, 0))] + [_const_spec(a) for a in weights]

    if tail == "transition":
        out_shape = jax.ShapeDtypeStruct((batch * (seq // 2), ct), ACT_DTYPE)
        out_specs = pl.BlockSpec((batch_tile * (seq // 2), ct), lambda b: (b, 0))
    else:
        out_shape = jax.ShapeDtypeStruct((batch, nc), jnp.float32)
        out_specs = pl.BlockSpec((batch_tile, nc), lambda b: (b, 0))

    kernel = _make_block_kernel(num_layers=num_layers, has_stem=has_stem,
                                has_layer_scale=has_layer_scale,
                                has_trans_scale=has_trans_scale, tail=tail, leaky=leaky,
                                seq=seq, batch_tile=batch_tile, base=base, growth=growth,
                                c_final=c_final)

    # Explicit scoped-VMEM limit: generous headroom over the estimate, but safely below the
    # physical capacity of every generation (v7x: 64 MiB per TensorCore).
    vmem_limit = int(min(max(2 * est_bytes(batch_tile), 32 * 2 ** 20), int(0.75 * vmem_cap)))

    return pl.pallas_call(
        kernel,
        out_shape=out_shape,
        grid=(batch // batch_tile,),
        in_specs=in_specs,
        out_specs=out_specs,
        scratch_shapes=[pltpu.VMEM((rows, c_final), ACT_DTYPE)],
        # TODO(synk): for production-sized S, add an S-tile grid axis with a 1-row halo.
        compiler_params=pltpu.CompilerParams(
            dimension_semantics=("parallel",),
            vmem_limit_bytes=vmem_limit),
    )(*inputs)


# ---------------- Parameters & forward glue ----------------------------------------------


def bn_fold(c, gamma=None, beta=None, mean=None, var=None):
    """Eval-mode BatchNorm1d folded into per-channel scale/bias.
    Defaults follow DweNet.__init__ (weight=1, bias=0) with fresh running stats; trained
    statistics can be plumbed through the keyword arguments."""
    gamma = jnp.ones((c,), jnp.float32) if gamma is None else gamma
    beta = jnp.zeros((c,), jnp.float32) if beta is None else beta
    mean = jnp.zeros((c,), jnp.float32) if mean is None else mean
    var = jnp.ones((c,), jnp.float32) if var is None else var
    scale = gamma * jax.lax.rsqrt(var + BN_EPS)
    bias = beta - mean * scale
    return scale, bias


def init_params(key, *, vocab, embed_dim, num_init_features, growth_rate,
                block_config, num_classes):
    keys = iter(jax.random.split(key, 256))

    def w(shape, s=0.05):
        return s * jax.random.normal(next(keys), shape, jnp.float32)

    emb = jax.random.normal(next(keys), (vocab, embed_dim), jnp.float32)
    emb = emb.at[1].set(0.0)                      # nn.Embedding padding_idx=1
    params = {"embedding": emb.astype(ACT_DTYPE), "blocks": []}

    # NOTE: weights are created directly in the kernel's layout: conv taps on a leading
    # axis of size 3, input channels in APPEND order (importing trained torch weights
    # requires permuting every consumer's Cin axis from torch's newest-first concat order),
    # Linear weights transposed to (in, out).
    num_features = num_init_features
    for i, num_layers in enumerate(block_config):
        blk = {}
        if i == 0:
            # conv0 -> norm0 -> relu0: the BN precedes the nonlinearity, so its scale
            # always folds into the conv weights; its bias becomes an additive term.
            s0, b0 = bn_fold(num_init_features)
            blk["stem_w"] = (w((3, embed_dim, num_init_features))
                             * s0[None, None, :]).astype(MATMUL_DTYPE)
            blk["stem_b"] = b0.reshape(1, -1)

        layer_w, layer_s, layer_b = [], [], []
        for j in range(num_layers):
            inplanes = num_features + j * growth_rate
            layer_w.append(w((3, inplanes, growth_rate)))
            s, b = bn_fold(growth_rate)
            layer_s.append(s)
            layer_b.append(b)
        # conv -> leaky -> BN: the BN scale folds into the conv weights only when strictly
        # positive (leaky(s*y) == s*leaky(y) iff s > 0); guarded host-side.
        if all(float(jnp.min(s)) > 0.0 for s in layer_s):
            layer_w = [wj * s[None, None, :] for wj, s in zip(layer_w, layer_s)]
            blk["scale"] = None
        else:
            blk["scale"] = jnp.stack(layer_s)             # (L, G) f32
        blk["layer_w"] = [wj.astype(MATMUL_DTYPE) for wj in layer_w]
        blk["bias"] = jnp.stack(layer_b)                  # (L, G) f32

        num_features = num_features + num_layers * growth_rate
        if i != len(block_config) - 1:
            ct = num_features // 2
            wt = w((num_features, ct))
            ts, tb = bn_fold(ct)
            # _Transition: conv1x1 -> leaky -> BN -> AvgPool1d(2,2).  Fold the BN scale and
            # the 0.5 avg-pool factor into the conv weights when the scale is positive.
            if float(jnp.min(ts)) > 0.0:
                wt = wt * (0.5 * ts)[None, :]
                blk["trans_scale"] = None
            else:
                blk["trans_scale"] = (0.5 * ts).reshape(1, -1)
            blk["trans_w"] = wt.astype(MATMUL_DTYPE)
            blk["trans_bias"] = tb.reshape(1, -1)
            num_features = ct
        else:
            # Linear biases are nn.init.constant_(m.bias, 0) in DweNet.__init__.
            blk["fc1_w"] = w((num_features * 2, num_features * 8)).astype(MATMUL_DTYPE)
            blk["fc1_b"] = jnp.zeros((1, num_features * 8), jnp.float32)
            blk["fc2_w"] = w((num_features * 8, num_features * 4)).astype(MATMUL_DTYPE)
            blk["fc2_b"] = jnp.zeros((1, num_features * 4), jnp.float32)
            blk["cls_w"] = w((num_features * 4, num_classes)).astype(MATMUL_DTYPE)
            blk["cls_b"] = jnp.zeros((1, num_classes), jnp.float32)
        params["blocks"].append(blk)
    return params


def dwenet_forward(token_ids, params, *, leaky=LEAKY):
    B, S = token_ids.shape
    # Embedding gather stays in plain JAX; torch's unsqueeze(1)/squeeze(3) are absorbed by
    # treating embed_dim as conv0's input-channel axis.
    emb = jnp.take(params["embedding"], token_ids, axis=0)        # (B, S, E)
    x = emb.reshape(B * S, emb.shape[-1])                         # flatten (B,S) into M rows
    seq = S
    n_blocks = len(params["blocks"])
    for i, blk in enumerate(params["blocks"]):
        is_last = i == n_blocks - 1
        x = fused_block(x, blk, batch=B, seq=seq, leaky=leaky,
                        has_stem=(i == 0),
                        tail="head" if is_last else "transition")
        if not is_last:
            seq //= 2
    return x                                                      # (B, num_classes) logits


if __name__ == "__main__":
    key = jax.random.PRNGKey(0)
    # Small shapes consistent with the module structure.
    vocab, embed_dim = 40, 32
    B, S = 2, 8
    growth_rate = 8
    block_config = (2, 2)
    num_init_features = 16
    num_classes = 2

    pkey, dkey = jax.random.split(key)
    params = init_params(pkey, vocab=vocab, embed_dim=embed_dim,
                         num_init_features=num_init_features,
                         growth_rate=growth_rate, block_config=block_config,
                         num_classes=num_classes)
    token_ids = jax.random.randint(dkey, (B, S), 0, vocab)

    out = dwenet_forward(token_ids, params)
    out = jax.block_until_ready(out)
    assert out.shape == (B, num_classes), out.shape
    print("KERNEL_OK")
</pallas_src>

<mosaic_0001>
module attributes {stable_mosaic.version = 11 : i64} {
  func.func @kernel(%arg0: i32, %arg1: memref<16x32xbf16, #tpu.memory_space<vmem>>, %arg2: memref<3x32x16xbf16, #tpu.memory_space<vmem>>, %arg3: memref<1x16xf32, #tpu.memory_space<vmem>>, %arg4: memref<3x16x8xbf16, #tpu.memory_space<vmem>>, %arg5: memref<3x24x8xbf16, #tpu.memory_space<vmem>>, %arg6: memref<2x8xf32, #tpu.memory_space<vmem>>, %arg7: memref<32x16xbf16, #tpu.memory_space<vmem>>, %arg8: memref<1x16xf32, #tpu.memory_space<vmem>>, %arg9: memref<8x16xbf16, #tpu.memory_space<vmem>>, %arg10: memref<16x32xbf16, #tpu.memory_space<vmem>>) attributes {dimension_semantics = [#tpu.dimension_semantics<parallel>], iteration_bounds = array<i64: 1>, scalar_prefetch = 0 : i64, scratch_operands = 1 : i64, tpu.core_type = #tpu.core_type<tc>, window_params = [{transform_indices = @transform_0, window_bounds = array<i64: 16, 32>}, {pipeline_mode = #tpu.pipeline_mode<synchronous>, transform_indices = @transform_1, window_bounds = array<i64: 3, 32, 16>}, {pipeline_mode = #tpu.pipeline_mode<synchronous>, transform_indices = @transform_2, window_bounds = array<i64: 1, 16>}, {pipeline_mode = #tpu.pipeline_mode<synchronous>, transform_indices = @transform_3, window_bounds = array<i64: 3, 16, 8>}, {pipeline_mode = #tpu.pipeline_mode<synchronous>, transform_indices = @transform_4, window_bounds = array<i64: 3, 24, 8>}, {pipeline_mode = #tpu.pipeline_mode<synchronous>, transform_indices = @transform_5, window_bounds = array<i64: 2, 8>}, {pipeline_mode = #tpu.pipeline_mode<synchronous>, transform_indices = @transform_6, window_bounds = array<i64: 32, 16>}, {pipeline_mode = #tpu.pipeline_mode<synchronous>, transform_indices = @transform_7, window_bounds = array<i64: 1, 16>}, {transform_indices = @transform_8, window_bounds = array<i64: 8, 16>}]} {
    %0 = tpu.iota {dimensions = array<i32: 0>} : vector<16x1xi32>
    %c8_i32 = arith.constant 8 : i32
    %c0_i32 = arith.constant 0 : i32
    %1 = arith.cmpi eq, %c8_i32, %c0_i32 : i32
    %c1_i32 = arith.constant 1 : i32
    %2 = arith.select %1, %c1_i32, %c8_i32 : i32
    %3 = vector.broadcast %2 : i32 to vector<16x1xi32>
    %4 = arith.remsi %0, %3 : vector<16x1xi32>
    %c0_i32_0 = arith.constant 0 : i32
    %5 = vector.broadcast %c0_i32_0 : i32 to vector<16x1xi32>
    %6 = arith.cmpi ne, %4, %5 : vector<16x1xi32>
    %c0_i32_1 = arith.constant 0 : i32
    %7 = vector.broadcast %c0_i32_1 : i32 to vector<16x1xi32>
    %8 = arith.cmpi slt, %4, %7 : vector<16x1xi32>
    %c0_i32_2 = arith.constant 0 : i32
    %9 = arith.cmpi slt, %2, %c0_i32_2 : i32
    %10 = vector.broadcast %9 : i1 to vector<16x1xi1>
    %11 = vector.broadcast %10 : vector<16x1xi1> to vector<16x1xi1>
    %12 = arith.xori %8, %11 : vector<16x1xi1>
    %13 = arith.andi %12, %6 : vector<16x1xi1>
    %14 = vector.broadcast %2 : i32 to vector<16x1xi32>
    %15 = arith.addi %4, %14 : vector<16x1xi32>
    %16 = arith.select %13, %15, %4 : vector<16x1xi1>, vector<16x1xi32>
    %c0_i32_3 = arith.constant 0 : i32
    %17 = vector.broadcast %c0_i32_3 : i32 to vector<16x1xi32>
    %18 = arith.cmpi ne, %16, %17 : vector<16x1xi32>
    %c7_i32 = arith.constant 7 : i32
    %19 = vector.broadcast %c7_i32 : i32 to vector<16x1xi32>
    %20 = arith.cmpi ne, %16, %19 : vector<16x1xi32>
    %c0 = arith.constant 0 : index
    %c0_4 = arith.constant 0 : index
    %21 = vector.load %arg1[%c0, %c0_4] : memref<16x32xbf16, #tpu.memory_space<vmem>>, vector<16x32xbf16>
    %c0_5 = arith.constant 0 : index
    %c0_6 = arith.constant 0 : index
    %c0_7 = arith.constant 0 : index
    %22 = vector.load %arg2[%c0_5, %c0_6, %c0_7] : memref<3x32x16xbf16, #tpu.memory_space<vmem>>, vector<1x32x16xbf16>
    %23 = vector.shape_cast %22 : vector<1x32x16xbf16> to vector<32x16xbf16>
    %cst = arith.constant dense<0.000000e+00> : vector<16x16xf32>
    %24 = tpu.matmul %21, %23, %cst {dimension_numbers = #tpu.dot_dimension_numbers<[1], [0], [0], [1], [0, 0, 1, 1], [], []>} : vector<16x32xbf16>, vector<32x16xbf16>, vector<16x16xf32> -> vector<16x16xf32>
    %c1 = arith.constant 1 : index
    %c0_8 = arith.constant 0 : index
    %c0_9 = arith.constant 0 : index
    %25 = vector.load %arg2[%c1, %c0_8, %c0_9] : memref<3x32x16xbf16, #tpu.memory_space<vmem>>, vector<1x32x16xbf16>
    %26 = vector.shape_cast %25 : vector<1x32x16xbf16> to vector<32x16xbf16>
    %cst_10 = arith.constant dense<0.000000e+00> : vector<16x16xf32>
    %27 = tpu.matmul %21, %26, %cst_10 {dimension_numbers = #tpu.dot_dimension_numbers<[1], [0], [0], [1], [0, 0, 1, 1], [], []>} : vector<16x32xbf16>, vector<32x16xbf16>, vector<16x16xf32> -> vector<16x16xf32>
    %c2 = arith.constant 2 : index
    %c0_11 = arith.constant 0 : index
    %c0_12 = arith.constant 0 : index
    %28 = vector.load %arg2[%c2, %c0_11, %c0_12] : memref<3x32x16xbf16, #tpu.memory_space<vmem>>, vector<1x32x16xbf16>
    %29 = vector.shape_cast %28 : vector<1x32x16xbf16> to vector<32x16xbf16>
    %cst_13 = arith.constant dense<0.000000e+00> : vector<16x16xf32>
    %30 = tpu.matmul %21, %29, %cst_13 {dimension_numbers = #tpu.dot_dimension_numbers<[1], [0], [0], [1], [0, 0, 1, 1], [], []>} : vector<16x32xbf16>, vector<32x16xbf16>, vector<16x16xf32> -> vector<16x16xf32>
    %c1_i32_14 = arith.constant 1 : i32
    %31 = tpu.dynamic_rotate %24 by %c1_i32_14 dim 0 : vector<16x16xf32>, i32 -> vector<16x16xf32>
    %cst_15 = arith.constant 0.000000e+00 : f32
    %32 = vector.shape_cast %18 : vector<16x1xi1> to vector<16x1xi1>
    %33 = vector.broadcast %32 : vector<16x1xi1> to vector<16x16xi1>
    %34 = vector.broadcast %cst_15 : f32 to vector<16x16xf32>
    %35 = arith.select %33, %31, %34 : vector<16x16xi1>, vector<16x16xf32>
    %c15_i32 = arith.constant 15 : i32
    %36 = tpu.dynamic_rotate %30 by %c15_i32 dim 0 : vector<16x16xf32>, i32 -> vector<16x16xf32>
    %cst_16 = arith.constant 0.000000e+00 : f32
    %37 = vector.shape_cast %20 : vector<16x1xi1> to vector<16x1xi1>
    %38 = vector.broadcast %37 : vector<16x1xi1> to vector<16x16xi1>
    %39 = vector.broadcast %cst_16 : f32 to vector<16x16xf32>
    %40 = arith.select %38, %36, %39 : vector<16x16xi1>, vector<16x16xf32>
    %41 = arith.addf %27, %35 : vector<16x16xf32>
    %42 = arith.addf %41, %40 : vector<16x16xf32>
    %c0_17 = arith.constant 0 : index
    %c0_18 = arith.constant 0 : index
    %43 = vector.load %arg3[%c0_17, %c0_18] : memref<1x16xf32, #tpu.memory_space<vmem>>, vector<1x16xf32>
    %44 = vector.broadcast %43 : vector<1x16xf32> to vector<16x16xf32>
    %45 = arith.addf %42, %44 : vector<16x16xf32>
    %cst_19 = arith.constant 0.000000e+00 : f32
    %46 = vector.broadcast %cst_19 : f32 to vector<16x16xf32>
    %47 = arith.cmpf ogt, %45, %46 : vector<16x16xf32>
    %cst_20 = arith.constant 2.000000e-02 : f32
    %48 = vector.broadcast %cst_20 : f32 to vector<16x16xf32>
    %49 = arith.mulf %48, %45 : vector<16x16xf32>
    %50 = arith.select %47, %45, %49 : vector<16x16xi1>, vector<16x16xf32>
    %51 = arith.truncf %50 : vector<16x16xf32> to vector<16x16xbf16>
    %c0_21 = arith.constant 0 : index
    %c0_22 = arith.constant 0 : index
    %52 = vector.load %arg10[%c0_21, %c0_22] : memref<16x32xbf16, #tpu.memory_space<vmem>>, vector<16x16xbf16>
    tpu.vector_store %arg10[%c0_21, %c0_22], %51 {strides = array<i32>} : memref<16x32xbf16, #tpu.memory_space<vmem>>, vector<16x16xbf16>,
    %c0_23 = arith.constant 0 : index
    %c0_24 = arith.constant 0 : index
    %53 = vector.load %arg6[%c0_23, %c0_24] : memref<2x8xf32, #tpu.memory_space<vmem>>, vector<2x8xf32>
    %c0_25 = arith.constant 0 : index
    %c0_26 = arith.constant 0 : index
    %54 = vector.load %arg10[%c0_25, %c0_26] : memref<16x32xbf16, #tpu.memory_space<vmem>>, vector<16x16xbf16>
    %c0_27 = arith.constant 0 : index
    %c0_28 = arith.constant 0 : index
    %c0_29 = arith.constant 0 : index
    %55 = vector.load %arg4[%c0_27, %c0_28, %c0_29] : memref<3x16x8xbf16, #tpu.memory_space<vmem>>, vector<1x16x8xbf16>
    %56 = vector.shape_cast %55 : vector<1x16x8xbf16> to vector<16x8xbf16>
    %cst_30 = arith.constant dense<0.000000e+00> : vector<16x8xf32>
    %57 = tpu.matmul %54, %56, %cst_30 {dimension_numbers = #tpu.dot_dimension_numbers<[1], [0], [0], [1], [0, 0, 1, 1], [], []>} : vector<16x16xbf16>, vector<16x8xbf16>, vector<16x8xf32> -> vector<16x8xf32>
    %c1_31 = arith.constant 1 : index
    %c0_32 = arith.constant 0 : index
    %c0_33 = arith.constant 0 : index
    %58 = vector.load %arg4[%c1_31, %c0_32, %c0_33] : memref<3x16x8xbf16, #tpu.memory_space<vmem>>, vector<1x16x8xbf16>
    %59 = vector.shape_cast %58 : vector<1x16x8xbf16> to vector<16x8xbf16>
    %cst_34 = arith.constant dense<0.000000e+00> : vector<16x8xf32>
    %60 = tpu.matmul %54, %59, %cst_34 {dimension_numbers = #tpu.dot_dimension_numbers<[1], [0], [0], [1], [0, 0, 1, 1], [], []>} : vector<16x16xbf16>, vector<16x8xbf16>, vector<16x8xf32> -> vector<16x8xf32>
    %c2_35 = arith.constant 2 : index
    %c0_36 = arith.constant 0 : index
    %c0_37 = arith.constant 0 : index
    %61 = vector.load %arg4[%c2_35, %c0_36, %c0_37] : memref<3x16x8xbf16, #tpu.memory_space<vmem>>, vector<1x16x8xbf16>
    %62 = vector.shape_cast %61 : vector<1x16x8xbf16> to vector<16x8xbf16>
    %cst_38 = arith.constant dense<0.000000e+00> : vector<16x8xf32>
    %63 = tpu.matmul %54, %62, %cst_38 {dimension_numbers = #tpu.dot_dimension_numbers<[1], [0], [0], [1], [0, 0, 1, 1], [], []>} : vector<16x16xbf16>, vector<16x8xbf16>, vector<16x8xf32> -> vector<16x8xf32>
    %c1_i32_39 = arith.constant 1 : i32
    %64 = tpu.dynamic_rotate %57 by %c1_i32_39 dim 0 : vector<16x8xf32>, i32 -> vector<16x8xf32>
    %cst_40 = arith.constant 0.000000e+00 : f32
    %65 = vector.shape_cast %18 : vector<16x1xi1> to vector<16x1xi1>
    %66 = vector.broadcast %65 : vector<16x1xi1> to vector<16x8xi1>
    %67 = vector.broadcast %cst_40 : f32 to vector<16x8xf32>
    %68 = arith.select %66, %64, %67 : vector<16x8xi1>, vector<16x8xf32>
    %c15_i32_41 = arith.constant 15 : i32
    %69 = tpu.dynamic_rotate %63 by %c15_i32_41 dim 0 : vector<16x8xf32>, i32 -> vector<16x8xf32>
    %cst_42 = arith.constant 0.000000e+00 : f32
    %70 = vector.shape_cast %20 : vector<16x1xi1> to vector<16x1xi1>
    %71 = vector.broadcast %70 : vector<16x1xi1> to vector<16x8xi1>
    %72 = vector.broadcast %cst_42 : f32 to vector<16x8xf32>
    %73 = arith.select %71, %69, %72 : vector<16x8xi1>, vector<16x8xf32>
    %74 = arith.addf %60, %68 : vector<16x8xf32>
    %75 = arith.addf %74, %73 : vector<16x8xf32>
    %cst_43 = arith.constant 0.000000e+00 : f32
    %76 = vector.broadcast %cst_43 : f32 to vector<16x8xf32>
    %77 = arith.cmpf ogt, %75, %76 : vector<16x8xf32>
    %cst_44 = arith.constant 2.000000e-02 : f32
    %78 = vector.broadcast %cst_44 : f32 to vector<16x8xf32>
    %79 = arith.mulf %78, %75 : vector<16x8xf32>
    %80 = arith.select %77, %75, %79 : vector<16x8xi1>, vector<16x8xf32>
    %81 = vector.extract_strided_slice %53 {offsets = [0, 0], sizes = [1, 8], strides = [1, 1]} : vector<2x8xf32> to vector<1x8xf32>
    %82 = vector.broadcast %81 : vector<1x8xf32> to vector<16x8xf32>
    %83 = arith.addf %80, %82 : vector<16x8xf32>
    %84 = arith.truncf %83 : vector<16x8xf32> to vector<16x8xbf16>
    %c0_45 = arith.constant 0 : index
    %c16 = arith.constant 16 : index
    %85 = vector.load %arg10[%c0_45, %c16] : memref<16x32xbf16, #tpu.memory_space<vmem>>, vector<16x8xbf16>
    tpu.vector_store %arg10[%c0_45, %c16], %84 {strides = array<i32>} : memref<16x32xbf16, #tpu.memory_space<vmem>>, vector<16x8xbf16>,
    %c0_46 = arith.constant 0 : index
    %c0_47 = arith.constant 0 : index
    %86 = vector.load %arg10[%c0_46, %c0_47] : memref<16x32xbf16, #tpu.memory_space<vmem>>, vector<16x24xbf16>
    %c0_48 = arith.constant 0 : index
    %c0_49 = arith.constant 0 : index
    %c0_50 = arith.constant 0 : index
    %87 = vector.load %arg5[%c0_48, %c0_49, %c0_50] : memref<3x24x8xbf16, #tpu.memory_space<vmem>>, vector<1x24x8xbf16>
    %88 = vector.shape_cast %87 : vector<1x24x8xbf16> to vector<24x8xbf16>
    %cst_51 = arith.constant dense<0.000000e+00> : vector<16x8xf32>
    %89 = tpu.matmul %86, %88, %cst_51 {dimension_numbers = #tpu.dot_dimension_numbers<[1], [0], [0], [1], [0, 0, 1, 1], [], []>} : vector<16x24xbf16>, vector<24x8xbf16>, vector<16x8xf32> -> vector<16x8xf32>
    %c1_52 = arith.constant 1 : index
    %c0_53 = arith.constant 0 : index
    %c0_54 = arith.constant 0 : index
    %90 = vector.load %arg5[%c1_52, %c0_53, %c0_54] : memref<3x24x8xbf16, #tpu.memory_space<vmem>>, vector<1x24x8xbf16>
    %91 = vector.shape_cast %90 : vector<1x24x8xbf16> to vector<24x8xbf16>
    %cst_55 = arith.constant dense<0.000000e+00> : vector<16x8xf32>
    %92 = tpu.matmul %86, %91, %cst_55 {dimension_numbers = #tpu.dot_dimension_numbers<[1], [0], [0], [1], [0, 0, 1, 1], [], []>} : vector<16x24xbf16>, vector<24x8xbf16>, vector<16x8xf32> -> vector<16x8xf32>
    %c2_56 = arith.constant 2 : index
    %c0_57 = arith.constant 0 : index
    %c0_58 = arith.constant 0 : index
    %93 = vector.load %arg5[%c2_56, %c0_57, %c0_58] : memref<3x24x8xbf16, #tpu.memory_space<vmem>>, vector<1x24x8xbf16>
    %94 = vector.shape_cast %93 : vector<1x24x8xbf16> to vector<24x8xbf16>
    %cst_59 = arith.constant dense<0.000000e+00> : vector<16x8xf32>
    %95 = tpu.matmul %86, %94, %cst_59 {dimension_numbers = #tpu.dot_dimension_numbers<[1], [0], [0], [1], [0, 0, 1, 1], [], []>} : vector<16x24xbf16>, vector<24x8xbf16>, vector<16x8xf32> -> vector<16x8xf32>
    %c1_i32_60 = arith.constant 1 : i32
    %96 = tpu.dynamic_rotate %89 by %c1_i32_60 dim 0 : vector<16x8xf32>, i32 -> vector<16x8xf32>
    %cst_61 = arith.constant 0.000000e+00 : f32
    %97 = vector.shape_cast %18 : vector<16x1xi1> to vector<16x1xi1>
    %98 = vector.broadcast %97 : vector<16x1xi1> to vector<16x8xi1>
    %99 = vector.broadcast %cst_61 : f32 to vector<16x8xf32>
    %100 = arith.select %98, %96, %99 : vector<16x8xi1>, vector<16x8xf32>
    %c15_i32_62 = arith.constant 15 : i32
    %101 = tpu.dynamic_rotate %95 by %c15_i32_62 dim 0 : vector<16x8xf32>, i32 -> vector<16x8xf32>
    %cst_63 = arith.constant 0.000000e+00 : f32
    %102 = vector.shape_cast %20 : vector<16x1xi1> to vector<16x1xi1>
    %103 = vector.broadcast %102 : vector<16x1xi1> to vector<16x8xi1>
    %104 = vector.broadcast %cst_63 : f32 to vector<16x8xf32>
    %105 = arith.select %103, %101, %104 : vector<16x8xi1>, vector<16x8xf32>
    %106 = arith.addf %92, %100 : vector<16x8xf32>
    %107 = arith.addf %106, %105 : vector<16x8xf32>
    %cst_64 = arith.constant 0.000000e+00 : f32
    %108 = vector.broadcast %cst_64 : f32 to vector<16x8xf32>
    %109 = arith.cmpf ogt, %107, %108 : vector<16x8xf32>
    %cst_65 = arith.constant 2.000000e-02 : f32
    %110 = vector.broadcast %cst_65 : f32 to vector<16x8xf32>
    %111 = arith.mulf %110, %107 : vector<16x8xf32>
    %112 = arith.select %109, %107, %111 : vector<16x8xi1>, vector<16x8xf32>
    %113 = vector.extract_strided_slice %53 {offsets = [1, 0], sizes = [1, 8], strides = [1, 1]} : vector<2x8xf32> to vector<1x8xf32>
    %114 = vector.broadcast %113 : vector<1x8xf32> to vector<16x8xf32>
    %115 = arith.addf %112, %114 : vector<16x8xf32>
    %116 = arith.truncf %115 : vector<16x8xf32> to vector<16x8xbf16>
    %c0_66 = arith.constant 0 : index
    %c24 = arith.constant 24 : index
    %117 = vector.load %arg10[%c0_66, %c24] : memref<16x32xbf16, #tpu.memory_space<vmem>>, vector<16x8xbf16>
    tpu.vector_store %arg10[%c0_66, %c24], %116 {strides = array<i32>} : memref<16x32xbf16, #tpu.memory_space<vmem>>, vector<16x8xbf16>,
    %c0_67 = arith.constant 0 : index
    %c0_68 = arith.constant 0 : index
    %118 = vector.load %arg10[%c0_67, %c0_68] : memref<16x32xbf16, #tpu.memory_space<vmem>>, vector<16x32xbf16>
    %c0_69 = arith.constant 0 : index
    %c0_70 = arith.constant 0 : index
    %119 = vector.load %arg7[%c0_69, %c0_70] : memref<32x16xbf16, #tpu.memory_space<vmem>>, vector<32x16xbf16>
    %cst_71 = arith.constant dense<0.000000e+00> : vector<16x16xf32>
    %120 = tpu.matmul %118, %119, %cst_71 {dimension_numbers = #tpu.dot_dimension_numbers<[1], [0], [0], [1], [0, 0, 1, 1], [], []>} : vector<16x32xbf16>, vector<32x16xbf16>, vector<16x16xf32> -> vector<16x16xf32>
    %cst_72 = arith.constant 0.000000e+00 : f32
    %121 = vector.broadcast %cst_72 : f32 to vector<16x16xf32>
    %122 = arith.cmpf ogt, %120, %121 : vector<16x16xf32>
    %cst_73 = arith.constant 2.000000e-02 : f32
    %123 = vector.broadcast %cst_73 : f32 to vector<16x16xf32>
    %124 = arith.mulf %123, %120 : vector<16x16xf32>
    %125 = arith.select %122, %120, %124 : vector<16x16xi1>, vector<16x16xf32>
    %126 = vector.shape_cast %125 : vector<16x16xf32> to vector<8x2x16xf32>
    %cst_74 = arith.constant dense<0.000000e+00> : vector<8x16xf32>
    %127 = vector.multi_reduction <add>, %126, %cst_74 [1] : vector<8x2x16xf32> to vector<8x16xf32>
    %c0_75 = arith.constant 0 : index
    %c0_76 = arith.constant 0 : index
    %128 = vector.load %arg8[%c0_75, %c0_76] : memref<1x16xf32, #tpu.memory_space<vmem>>, vector<1x16xf32>
    %129 = vector.broadcast %128 : vector<1x16xf32> to vector<8x16xf32>
    %130 = arith.addf %127, %129 : vector<8x16xf32>
    %131 = arith.truncf %130 : vector<8x16xf32> to vector<8x16xbf16>
    %c0_77 = arith.constant 0 : index
    %c0_78 = arith.constant 0 : index
    %132 = vector.load %arg9[%c0_77, %c0_78] : memref<8x16xbf16, #tpu.memory_space<vmem>>, vector<8x16xbf16>
    tpu.vector_store %arg9[%c0_77, %c0_78], %131 {strides = array<i32>} : memref<8x16xbf16, #tpu.memory_space<vmem>>, vector<8x16xbf16>,
    return
  }
  func.func @transform_0(%arg0: i32) -> (i32, i32) {
    %c0_i32 = arith.constant 0 : i32
    %c0_i32_0 = arith.constant 0 : i32
    return %arg0, %c0_i32 : i32, i32
  }
  func.func @transform_1(%arg0: i32) -> (i32, i32, i32) {
    %c0_i32 = arith.constant 0 : i32
    %c0_i32_0 = arith.constant 0 : i32
    %c0_i32_1 = arith.constant 0 : i32
    %c0_i32_2 = arith.constant 0 : i32
    return %c0_i32, %c0_i32_0, %c0_i32_1 : i32, i32, i32
  }
  func.func @transform_2(%arg0: i32) -> (i32, i32) {
    %c0_i32 = arith.constant 0 : i32
    %c0_i32_0 = arith.constant 0 : i32
    %c0_i32_1 = arith.constant 0 : i32
    return %c0_i32, %c0_i32_0 : i32, i32
  }
  func.func @transform_3(%arg0: i32) -> (i32, i32, i32) {
    %c0_i32 = arith.constant 0 : i32
    %c0_i32_0 = arith.constant 0 : i32
    %c0_i32_1 = arith.constant 0 : i32
    %c0_i32_2 = arith.constant 0 : i32
    return %c0_i32, %c0_i32_0, %c0_i32_1 : i32, i32, i32
  }
  func.func @transform_4(%arg0: i32) -> (i32, i32, i32) {
    %c0_i32 = arith.constant 0 : i32
    %c0_i32_0 = arith.constant 0 : i32
    %c0_i32_1 = arith.constant 0 : i32
    %c0_i32_2 = arith.constant 0 : i32
    return %c0_i32, %c0_i32_0, %c0_i32_1 : i32, i32, i32
  }
  func.func @transform_5(%arg0: i32) -> (i32, i32) {
    %c0_i32 = arith.constant 0 : i32
    %c0_i32_0 = arith.constant 0 : i32
    %c0_i32_1 = arith.constant 0 : i32
    return %c0_i32, %c0_i32_0 : i32, i32
  }
  func.func @transform_6(%arg0: i32) -> (i32, i32) {
    %c0_i32 = arith.constant 0 : i32
    %c0_i32_0 = arith.constant 0 : i32
    %c0_i32_1 = arith.constant 0 : i32
    return %c0_i32, %c0_i32_0 : i32, i32
  }
  func.func @transform_7(%arg0: i32) -> (i32, i32) {
    %c0_i32 = arith.constant 0 : i32
    %c0_i32_0 = arith.constant 0 : i32
    %c0_i32_1 = arith.constant 0 : i32
    return %c0_i32, %c0_i32_0 : i32, i32
  }
  func.func @transform_8(%arg0: i32) -> (i32, i32) {
    %c0_i32 = arith.constant 0 : i32
    %c0_i32_0 = arith.constant 0 : i32
    return %arg0, %c0_i32 : i32, i32
  }
}

</mosaic_0001>

<llo_original>
// kernel: tpu_custom_call.1
$region0: #{tpu_custom_call.1}
  #allocation0 [shape = 'u32[]', space=smem, size = 0x4, offset = 0x4, fixed_abs, tag = 'smem constant byte address 0x4 - core index']
  #allocation1 [shape = 'u32[144,128]{1,0:T(1,128)}', space=vmem, size = 0x12000, scoped, tag = 'internal scratch']
  #allocation2 [shape = 'bf16[16,32]{1,0:T(16,128)(2,1)}', space=vmem, size = 0x1000, scoped, tag = 'scratch operand']
  %s0 = inlined_call_operand.vmem [shape: bf16[16,32], index: 0, kind: input, shape index: {}]
  %s1 = inlined_call_operand.vmem [shape: bf16[3,32,16], index: 1, kind: input, shape index: {}]
  %s2 = inlined_call_operand.vmem [shape: f32[1,16], index: 2, kind: input, shape index: {}]
  %s3 = inlined_call_operand.vmem [shape: bf16[3,16,8], index: 3, kind: input, shape index: {}]
  %s4 = inlined_call_operand.vmem [shape: bf16[3,24,8], index: 4, kind: input, shape index: {}]
  %s5 = inlined_call_operand.vmem [shape: f32[2,8], index: 5, kind: input, shape index: {}]
  %s6 = inlined_call_operand.vmem [shape: bf16[32,16], index: 6, kind: input, shape index: {}]
  %s7 = inlined_call_operand.vmem [shape: f32[1,16], index: 7, kind: input, shape index: {}]
  %s8 = inlined_call_operand.hbm [shape: bf16[8,16], index: 8, kind: output, shape index: {}]
  %s9 = sld [smem:[#allocation0]]
  $region42: #{tpu_custom_call.1} parent=0
    _
  %s11 = ssub.s32 1, %s9
  %s12 = scalar_select 0, %s11, %s9
  $region1: #{tpu_custom_call.1} parent=0
    #allocation3 [shape = 'u8[2048]{0}', space=vmem, size = 0x800, scoped, tag = 'output window, operand 0, single buffered']
    #allocation4 [shape = 's32[1]{0}', space=sflag, size = 0x4, scoped, tag = 'scoped memory for tpu_custom_call.1']
    %13 = vsyncpa [#allocation4], 0
    // Predicated region
    $region2: #{tpu_custom_call.1} parent=1 // pred_check
      _
    $region3: #{tpu_custom_call.1} parent=1 // pred_check_branch
      %15 = sbr.rel (0) target = $region5
    $region4: #{tpu_custom_call.1} parent=1 // pred_region
      _
    $region5: #{tpu_custom_call.1} parent=1 // pred_fallthru
      _
    // Predicated region
    $region6: #{tpu_custom_call.1} parent=1 // pred_check
      _
    $region7: #{tpu_custom_call.1} parent=1 // pred_check_branch
      %17 = sbr.rel (0) target = $region9
    $region8: #{tpu_custom_call.1} parent=1 // pred_region
      _
    $region9: #{tpu_custom_call.1} parent=1 // pred_fallthru
      _
    // Predicated region
    $region10: #{tpu_custom_call.1} parent=1 // pred_check
      _
    $region11: #{tpu_custom_call.1} parent=1 // pred_check_branch
      %19 = sbr.rel (0) target = $region13
    $region12: #{tpu_custom_call.1} parent=1 // pred_region
      _
    $region13: #{tpu_custom_call.1} parent=1 // pred_fallthru
      _
    // Predicated region
    $region14: #{tpu_custom_call.1} parent=1 // pred_check
      _
    $region15: #{tpu_custom_call.1} parent=1 // pred_check_branch
      %21 = sbr.rel (0) target = $region17
    $region16: #{tpu_custom_call.1} parent=1 // pred_region
      _
    $region17: #{tpu_custom_call.1} parent=1 // pred_fallthru
      _
    // Predicated region
    $region18: #{tpu_custom_call.1} parent=1 // pred_check
      _
    $region19: #{tpu_custom_call.1} parent=1 // pred_check_branch
      %23 = sbr.rel (0) target = $region21
    $region20: #{tpu_custom_call.1} parent=1 // pred_region
      _
    $region21: #{tpu_custom_call.1} parent=1 // pred_fallthru
      _
    // Predicated region
    $region22: #{tpu_custom_call.1} parent=1 // pred_check
      _
    $region23: #{tpu_custom_call.1} parent=1 // pred_check_branch
      %25 = sbr.rel (0) target = $region25
    $region24: #{tpu_custom_call.1} parent=1 // pred_region
      _
    $region25: #{tpu_custom_call.1} parent=1 // pred_fallthru
      _
    // Predicated region
    $region26: #{tpu_custom_call.1} parent=1 // pred_check
      _
    $region27: #{tpu_custom_call.1} parent=1 // pred_check_branch
      %27 = sbr.rel (0) target = $region29
    $region28: #{tpu_custom_call.1} parent=1 // pred_region
      _
    $region29: #{tpu_custom_call.1} parent=1 // pred_fallthru
      _
    // Predicated region
    $region30: #{tpu_custom_call.1} parent=1 // pred_check
      _
    $region31: #{tpu_custom_call.1} parent=1 // pred_check_branch
      %29 = sbr.rel (0) target = $region33
    $region32: #{tpu_custom_call.1} parent=1 // pred_region
      _
    $region33: #{tpu_custom_call.1} parent=1 // pred_fallthru
      _
    %v31 = vlaneseq
    %v32 = vshrl.u32 %v31, 7
    %v33 = vadd.s32 %v32, 8
    %vm34 = vcmp.lt.s32.totalorder %v32, 0
    %v35 = vsub.s32 0, %v32
    %v36 = vsel %vm34, %v35, %v32
    %v37 = vshrl.u32 %v36, 3
    %v38 = vand.u32 %v36, 7
    %v39 = vsub.s32 0, %v38
    %v40 = vsel %vm34, %v39, %v38
    %vm41 = vcmp.lt.s32.totalorder %v33, 0
    %v42 = vsub.s32 0, %v33
    %v43 = vsel %vm41, %v42, %v33
    %v44 = vshrl.u32 %v43, 3
    %v45 = vand.u32 %v43, 7
    %v46 = vsub.s32 0, %v45
    %v47 = vsel %vm41, %v46, %v45
    %vm48 = vcmp.ne.s32.totalorder %v40, 0
    %vm49 = vcmp.ne.s32.totalorder %v47, 0
    %vm50 = vcmp.lt.s32.totalorder %v40, 0
    %vm51 = vcmp.lt.s32.totalorder %v47, 0
    %vm52 = vmand %vm50, %vm48
    %vm53 = vmand %vm51, %vm49
    %v54 = vadd.s32 %v40, 8
    %v55 = vadd.s32 %v47, 8
    %v56 = vsel %vm52, %v54, %v40
    %v57 = vsel %vm53, %v55, %v47
    %vm58 = vcmp.ne.s32.totalorder %v56, 0
    %vm59 = vcmp.ne.s32.totalorder %v57, 0
    %vm60 = vcmp.ne.s32.totalorder %v56, 7
    %vm61 = vcmp.ne.s32.totalorder %v57, 7
    %v62 = vld [vmem:[%s0] sm:$0xf]
    %v63 = vld [vmem:[%s0 + $0x4] sm:$0xf]
    %v64 = vld [vmem:[%s1] sm:$0xf]
    %v65 = vld [vmem:[%s1 + $0x4] sm:$0xf]
    %v66 = vld [vmem:[%s1 + $0x8] sm:$0xf]
    %v67 = vld [vmem:[%s1 + $0xc] sm:$0xf]
    %v70 = vunpack.c.l.b16 %v62
    %v71 = vunpack.c.l.b16 %v63
    %v72 = vpack.c.b16 %v71, %v70
    %v77 = vunpack.c.l.b16 %v64
    %v78 = vunpack.c.l.b16 %v65
    %v79 = vunpack.c.l.b16 %v66
    %v80 = vunpack.c.l.b16 %v67
    %v81 = vpack.c.b16 %v78, %v77
    %v82 = vpack.c.b16 %v80, %v79
    %vm85 = vcmask 261120
    %v87 = vsel %vm85, %v72, 0
    %89 = vmatprep.subr.bf16.mxu0 0
    %90 = vmatpush1.bf16.msra.mxu0 %v81
    %91 = vmatprep.subr.bf16.mxu0 0
    %92 = vmatpush1.bf16.msra.mxu0 %v82
    %93 = vmatprep.subr.bf16.mxu0 0
    %94 = vmatpush1.bf16.msra.mxu0 0
    %95 = vmatprep.subr.bf16.mxu0 0
    %96 = vmatpush1.bf16.msra.mxu0 0
    %97 = vmatprep.subr.bf16.mxu0 0
    %98 = vmatpush1.bf16.msra.mxu0 0
    %99 = vmatprep.subr.bf16.mxu0 0
    %100 = vmatpush1.bf16.msra.mxu0 0
    %101 = vmatprep.subr.bf16.mxu0 0
    %102 = vmatpush1.bf16.msra.mxu0 0
    %103 = vmatprep.subr.bf16.mxu0 0
    %104 = vmatpush1.bf16.msra.mxu0 0
    %105 = vmatprep.subr.bf16.mxu0 0
    %106 = vmatpush1.bf16.msra.mxu0 0
    %107 = vmatprep.subr.bf16.mxu0 0
    %108 = vmatpush1.bf16.msra.mxu0 0
    %109 = vmatprep.subr.bf16.mxu0 0
    %110 = vmatpush1.bf16.msra.mxu0 0
    %111 = vmatprep.subr.bf16.mxu0 0
    %112 = vmatpush1.bf16.msra.mxu0 0
    %113 = vmatprep.subr.bf16.mxu0 0
    %114 = vmatpush1.bf16.msra.mxu0 0
    %115 = vmatprep.subr.bf16.mxu0 0
    %116 = vmatpush1.bf16.msra.mxu0 0
    %117 = vmatprep.subr.bf16.mxu0 0
    %118 = vmatpush1.bf16.msra.mxu0 0
    %119 = vmatprep.subr.bf16.mxu0 0
    %120 = vmatpush1.bf16.msra.mxu0 0
    %121 = vmatprep.mubr.bf16.mxu0 0
    %122 = vmatmul.mubr.bf16.gmra.mrb[0].mxu0 %v87
    %v123 = vpop.f32.mrb[0].mxu0
    %v124 = vadd.f32 0.0, %v123
    %v125 = vpop.f32.mrb[0].mxu0
    %v126 = vpop.f32.mrb[0].mxu0
    %v127 = vadd.f32 0.0, %v126
    %v128 = vpop.f32.mrb[0].mxu0
    %129 = vdwg.mxu0
    %s130 = scalar_lea.vmem %s1, 16
    %v131 = vld [vmem:[%s130] sm:$0xf]
    %v132 = vld [vmem:[%s130 + $0x4] sm:$0xf]
    %v133 = vld [vmem:[%s130 + $0x8] sm:$0xf]
    %v134 = vld [vmem:[%s130 + $0xc] sm:$0xf]
    %s135 = scalar_lea.vmem %s1, 32
    %v136 = vld [vmem:[%s135] sm:$0xf]
    %v137 = vld [vmem:[%s135 + $0x4] sm:$0xf]
    %v138 = vld [vmem:[%s135 + $0x8] sm:$0xf]
    %v139 = vld [vmem:[%s135 + $0xc] sm:$0xf]
    %v144 = vunpack.c.l.b16 %v136
    %v145 = vunpack.c.l.b16 %v137
    %v146 = vunpack.c.l.b16 %v138
    %v147 = vunpack.c.l.b16 %v139
    %v148 = vpack.c.b16 %v145, %v144
    %v149 = vpack.c.b16 %v147, %v146
    %152 = vmatprep.subr.bf16.mxu0 0
    %153 = vmatpush1.bf16.msra.mxu0 %v148
    %154 = vmatprep.subr.bf16.mxu0 0
    %155 = vmatpush1.bf16.msra.mxu0 %v149
    %156 = vmatprep.subr.bf16.mxu0 0
    %157 = vmatpush1.bf16.msra.mxu0 0
    %158 = vmatprep.subr.bf16.mxu0 0
    %159 = vmatpush1.bf16.msra.mxu0 0
    %160 = vmatprep.subr.bf16.mxu0 0
    %161 = vmatpush1.bf16.msra.mxu0 0
    %162 = vmatprep.subr.bf16.mxu0 0
    %163 = vmatpush1.bf16.msra.mxu0 0
    %164 = vmatprep.subr.bf16.mxu0 0
    %165 = vmatpush1.bf16.msra.mxu0 0
    %166 = vmatprep.subr.bf16.mxu0 0
    %167 = vmatpush1.bf16.msra.mxu0 0
    %168 = vmatprep.subr.bf16.mxu0 0
    %169 = vmatpush1.bf16.msra.mxu0 0
    %170 = vmatprep.subr.bf16.mxu0 0
    %171 = vmatpush1.bf16.msra.mxu0 0
    %172 = vmatprep.subr.bf16.mxu0 0
    %173 = vmatpush1.bf16.msra.mxu0 0
    %174 = vmatprep.subr.bf16.mxu0 0
    %175 = vmatpush1.bf16.msra.mxu0 0
    %176 = vmatprep.subr.bf16.mxu0 0
    %177 = vmatpush1.bf16.msra.mxu0 0
    %178 = vmatprep.subr.bf16.mxu0 0
    %179 = vmatpush1.bf16.msra.mxu0 0
    %180 = vmatprep.subr.bf16.mxu0 0
    %181 = vmatpush1.bf16.msra.mxu0 0
    %182 = vmatprep.subr.bf16.mxu0 0
    %183 = vmatpush1.bf16.msra.mxu0 0
    %184 = vmatprep.mubr.bf16.mxu0 0
    %185 = vmatmul.mubr.bf16.gmra.mrb[0].mxu0 %v87
    %v186 = vpop.f32.mrb[0].mxu0
    %v187 = vadd.f32 0.0, %v186
    %v188 = vpop.f32.mrb[0].mxu0
    %v189 = vpop.f32.mrb[0].mxu0
    %v190 = vadd.f32 0.0, %v189
    %v191 = vpop.f32.mrb[0].mxu0
    %192 = vdwg.mxu0
    %v193 = vrot.slane %v124, 7
    %v194 = vrot.slane %v127, 7
    %vm195 = vcmp.lt.s32.totalorder %v32, 1
    %v196 = vsel %vm195, %v193, %v194
    %v197 = vsel %vm195, %v194, %v193
    %v198 = vsel %vm58, 1, 0
    %v199 = vsel %vm59, 1, 0
    %vm200 = vcmp.eq.s32.totalorder %v198, 1
    %vm201 = vcmp.eq.s32.totalorder %v199, 1
    %v202 = vsel %vm200, %v197, 0.0
    %v203 = vsel %vm201, %v196, 0.0
    %v204 = vrot.slane %v187, 1
    %v205 = vrot.slane %v190, 1
    %vm206 = vcmp.lt.s32.totalorder %v32, 7
    %v207 = vsel %vm206, %v204, %v205
    %v208 = vsel %vm206, %v205, %v204
    %v209 = vsel %vm60, 1, 0
    %v210 = vsel %vm61, 1, 0
    %vm211 = vcmp.eq.s32.totalorder %v209, 1
    %vm212 = vcmp.eq.s32.totalorder %v210, 1
    %v213 = vsel %vm211, %v207, 0.0
    %v214 = vsel %vm212, %v208, 0.0
    %v219 = vunpack.c.l.b16 %v131
    %v220 = vunpack.c.l.b16 %v132
    %v221 = vunpack.c.l.b16 %v133
    %v222 = vunpack.c.l.b16 %v134
    %v223 = vpack.c.b16 %v220, %v219
    %v224 = vpack.c.b16 %v222, %v221
    %227 = vmatprep.subr.bf16.mxu0 0
    %228 = vmatpush1.bf16.msra.mxu0 %v223
    %229 = vmatprep.subr.bf16.mxu0 0
    %230 = vmatpush1.bf16.msra.mxu0 %v224
    %231 = vmatprep.subr.bf16.mxu0 0
    %232 = vmatpush1.bf16.msra.mxu0 0
    %233 = vmatprep.subr.bf16.mxu0 0
    %234 = vmatpush1.bf16.msra.mxu0 0
    %235 = vmatprep.subr.bf16.mxu0 0
    %236 = vmatpush1.bf16.msra.mxu0 0
    %237 = vmatprep.subr.bf16.mxu0 0
    %238 = vmatpush1.bf16.msra.mxu0 0
    %239 = vmatprep.subr.bf16.mxu0 0
    %240 = vmatpush1.bf16.msra.mxu0 0
    %241 = vmatprep.subr.bf16.mxu0 0
    %242 = vmatpush1.bf16.msra.mxu0 0
    %243 = vmatprep.subr.bf16.mxu0 0
    %244 = vmatpush1.bf16.msra.mxu0 0
    %245 = vmatprep.subr.bf16.mxu0 0
    %246 = vmatpush1.bf16.msra.mxu0 0
    %247 = vmatprep.subr.bf16.mxu0 0
    %248 = vmatpush1.bf16.msra.mxu0 0
    %249 = vmatprep.subr.bf16.mxu0 0
    %250 = vmatpush1.bf16.msra.mxu0 0
    %251 = vmatprep.subr.bf16.mxu0 0
    %252 = vmatpush1.bf16.msra.mxu0 0
    %253 = vmatprep.subr.bf16.mxu0 0
    %254 = vmatpush1.bf16.msra.mxu0 0
    %255 = vmatprep.subr.bf16.mxu0 0
    %256 = vmatpush1.bf16.msra.mxu0 0
    %257 = vmatprep.subr.bf16.mxu0 0
    %258 = vmatpush1.bf16.msra.mxu0 0
    %259 = vmatprep.mubr.bf16.mxu0 0
    %260 = vmatmul.mubr.bf16.gmra.mrb[0].mxu0 %v87
    %v261 = vpop.f32.mrb[0].mxu0
    %v262 = vadd.f32 %v202, %v261
    %v263 = vpop.f32.mrb[0].mxu0
    %v264 = vpop.f32.mrb[0].mxu0
    %v265 = vadd.f32 %v203, %v264
    %v266 = vpop.f32.mrb[0].mxu0
    %267 = vdwg.mxu0
    %v268 = vadd.f32 %v262, %v213
    %v269 = vadd.f32 %v265, %v214
    %v270 = vld [vmem:[%s2] sm:$0x1]
    %v272 = vlaneseq
    %v273 = vshrl.u32 %v272, 7
    %v274 = vsub.s32 0, %v273
    %v275 = vrot.slane %v270, %v274
    %v277 = vadd.f32 %v268, %v275
    %v278 = vadd.f32 %v269, %v275
    %vm279 = vcmp.gt.f32.partialorder %v277, 0.0
    %vm280 = vcmp.gt.f32.partialorder %v278, 0.0
    %v281 = vmul.f32 %v277, 0.02
    %v282 = vmul.f32 %v278, 0.02
    %v283 = vsel %vm279, %v277, %v281
    %v284 = vsel %vm280, %v278, %v282
    %v285 = vpack.c.bf16 %v284, %v283
    %vm286 = vcmask 130048
    %287 = vst.msk [vmem:[#allocation2] sm:$0xff] %vm286, %v285
    %v288 = vld [vmem:[%s5] sm:$0x3]
    %v289 = vld [vmem:[#allocation2] sm:$0xff]
    %v290 = vld [vmem:[%s3] sm:$0xf]
    %v291 = vld [vmem:[%s3 + $0x4] sm:$0xf]
    %v294 = vunpack.c.l.b16 %v290
    %v295 = vunpack.c.l.b16 %v291
    %v296 = vpack.c.b16 %v295, %v294
    %v299 = vsel %vm286, %v289, 0
    %301 = vmatprep.subr.bf16.mxu0 0
    %302 = vmatpush1.bf16.msra.mxu0 %v296
    %303 = vmatprep.subr.bf16.mxu0 0
    %304 = vmatpush1.bf16.msra.mxu0 0
    %305 = vmatprep.subr.bf16.mxu0 0
    %306 = vmatpush1.bf16.msra.mxu0 0
    %307 = vmatprep.subr.bf16.mxu0 0
    %308 = vmatpush1.bf16.msra.mxu0 0
    %309 = vmatprep.subr.bf16.mxu0 0
    %310 = vmatpush1.bf16.msra.mxu0 0
    %311 = vmatprep.subr.bf16.mxu0 0
    %312 = vmatpush1.bf16.msra.mxu0 0
    %313 = vmatprep.subr.bf16.mxu0 0
    %314 = vmatpush1.bf16.msra.mxu0 0
    %315 = vmatprep.subr.bf16.mxu0 0
    %316 = vmatpush1.bf16.msra.mxu0 0
    %317 = vmatprep.subr.bf16.mxu0 0
    %318 = vmatpush1.bf16.msra.mxu0 0
    %319 = vmatprep.subr.bf16.mxu0 0
    %320 = vmatpush1.bf16.msra.mxu0 0
    %321 = vmatprep.subr.bf16.mxu0 0
    %322 = vmatpush1.bf16.msra.mxu0 0
    %323 = vmatprep.subr.bf16.mxu0 0
    %324 = vmatpush1.bf16.msra.mxu0 0
    %325 = vmatprep.subr.bf16.mxu0 0
    %326 = vmatpush1.bf16.msra.mxu0 0
    %327 = vmatprep.subr.bf16.mxu0 0
    %328 = vmatpush1.bf16.msra.mxu0 0
    %329 = vmatprep.subr.bf16.mxu0 0
    %330 = vmatpush1.bf16.msra.mxu0 0
    %331 = vmatprep.subr.bf16.mxu0 0
    %332 = vmatpush1.bf16.msra.mxu0 0
    %333 = vmatprep.mubr.bf16.mxu0 0
    %334 = vmatmul.mubr.bf16.gmra.mrb[0].mxu0 %v299
    %v335 = vpop.f32.mrb[0].mxu0
    %v336 = vadd.f32 0.0, %v335
    %v337 = vpop.f32.mrb[0].mxu0
    %v338 = vpop.f32.mrb[0].mxu0
    %v339 = vadd.f32 0.0, %v338
    %v340 = vpop.f32.mrb[0].mxu0
    %341 = vdwg.mxu0
    %s342 = scalar_lea.vmem %s3, 8
    %v343 = vld [vmem:[%s342] sm:$0xf]
    %v344 = vld [vmem:[%s342 + $0x4] sm:$0xf]
    %s345 = scalar_lea.vmem %s3, 16
    %v346 = vld [vmem:[%s345] sm:$0xf]
    %v347 = vld [vmem:[%s345 + $0x4] sm:$0xf]
    %v350 = vunpack.c.l.b16 %v346
    %v351 = vunpack.c.l.b16 %v347
    %v352 = vpack.c.b16 %v351, %v350
    %354 = vmatprep.subr.bf16.mxu0 0
    %355 = vmatpush1.bf16.msra.mxu0 %v352
    %356 = vmatprep.subr.bf16.mxu0 0
    %357 = vmatpush1.bf16.msra.mxu0 0
    %358 = vmatprep.subr.bf16.mxu0 0
    %359 = vmatpush1.bf16.msra.mxu0 0
    %360 = vmatprep.subr.bf16.mxu0 0
    %361 = vmatpush1.bf16.msra.mxu0 0
    %362 = vmatprep.subr.bf16.mxu0 0
    %363 = vmatpush1.bf16.msra.mxu0 0
    %364 = vmatprep.subr.bf16.mxu0 0
    %365 = vmatpush1.bf16.msra.mxu0 0
    %366 = vmatprep.subr.bf16.mxu0 0
    %367 = vmatpush1.bf16.msra.mxu0 0
    %368 = vmatprep.subr.bf16.mxu0 0
    %369 = vmatpush1.bf16.msra.mxu0 0
    %370 = vmatprep.subr.bf16.mxu0 0
    %371 = vmatpush1.bf16.msra.mxu0 0
    %372 = vmatprep.subr.bf16.mxu0 0
    %373 = vmatpush1.bf16.msra.mxu0 0
    %374 = vmatprep.subr.bf16.mxu0 0
    %375 = vmatpush1.bf16.msra.mxu0 0
    %376 = vmatprep.subr.bf16.mxu0 0
    %377 = vmatpush1.bf16.msra.mxu0 0
    %378 = vmatprep.subr.bf16.mxu0 0
    %379 = vmatpush1.bf16.msra.mxu0 0
    %380 = vmatprep.subr.bf16.mxu0 0
    %381 = vmatpush1.bf16.msra.mxu0 0
    %382 = vmatprep.subr.bf16.mxu0 0
    %383 = vmatpush1.bf16.msra.mxu0 0
    %384 = vmatprep.subr.bf16.mxu0 0
    %385 = vmatpush1.bf16.msra.mxu0 0
    %386 = vmatprep.mubr.bf16.mxu0 0
    %387 = vmatmul.mubr.bf16.gmra.mrb[0].mxu0 %v299
    %v388 = vpop.f32.mrb[0].mxu0
    %v389 = vadd.f32 0.0, %v388
    %v390 = vpop.f32.mrb[0].mxu0
    %v391 = vpop.f32.mrb[0].mxu0
    %v392 = vadd.f32 0.0, %v391
    %v393 = vpop.f32.mrb[0].mxu0
    %394 = vdwg.mxu0
    %v395 = vrot.slane %v336, 7
    %v396 = vrot.slane %v339, 7
    %v397 = vsel %vm195, %v395, %v396
    %v398 = vsel %vm195, %v396, %v395
    %v399 = vsel %vm200, %v398, 0.0
    %v400 = vsel %vm201, %v397, 0.0
    %v401 = vrot.slane %v389, 1
    %v402 = vrot.slane %v392, 1
    %v403 = vsel %vm206, %v401, %v402
    %v404 = vsel %vm206, %v402, %v401
    %v405 = vsel %vm211, %v403, 0.0
    %v406 = vsel %vm212, %v404, 0.0
    %v409 = vunpack.c.l.b16 %v343
    %v410 = vunpack.c.l.b16 %v344
    %v411 = vpack.c.b16 %v410, %v409
    %413 = vmatprep.subr.bf16.mxu0 0
    %414 = vmatpush1.bf16.msra.mxu0 %v411
    %415 = vmatprep.subr.bf16.mxu0 0
    %416 = vmatpush1.bf16.msra.mxu0 0
    %417 = vmatprep.subr.bf16.mxu0 0
    %418 = vmatpush1.bf16.msra.mxu0 0
    %419 = vmatprep.subr.bf16.mxu0 0
    %420 = vmatpush1.bf16.msra.mxu0 0
    %421 = vmatprep.subr.bf16.mxu0 0
    %422 = vmatpush1.bf16.msra.mxu0 0
    %423 = vmatprep.subr.bf16.mxu0 0
    %424 = vmatpush1.bf16.msra.mxu0 0
    %425 = vmatprep.subr.bf16.mxu0 0
    %426 = vmatpush1.bf16.msra.mxu0 0
    %427 = vmatprep.subr.bf16.mxu0 0
    %428 = vmatpush1.bf16.msra.mxu0 0
    %429 = vmatprep.subr.bf16.mxu0 0
    %430 = vmatpush1.bf16.msra.mxu0 0
    %431 = vmatprep.subr.bf16.mxu0 0
    %432 = vmatpush1.bf16.msra.mxu0 0
    %433 = vmatprep.subr.bf16.mxu0 0
    %434 = vmatpush1.bf16.msra.mxu0 0
    %435 = vmatprep.subr.bf16.mxu0 0
    %436 = vmatpush1.bf16.msra.mxu0 0
    %437 = vmatprep.subr.bf16.mxu0 0
    %438 = vmatpush1.bf16.msra.mxu0 0
    %439 = vmatprep.subr.bf16.mxu0 0
    %440 = vmatpush1.bf16.msra.mxu0 0
    %441 = vmatprep.subr.bf16.mxu0 0
    %442 = vmatpush1.bf16.msra.mxu0 0
    %443 = vmatprep.subr.bf16.mxu0 0
    %444 = vmatpush1.bf16.msra.mxu0 0
    %445 = vmatprep.mubr.bf16.mxu0 0
    %446 = vmatmul.mubr.bf16.gmra.mrb[0].mxu0 %v299
    %v447 = vpop.f32.mrb[0].mxu0
    %v448 = vadd.f32 %v399, %v447
    %v449 = vpop.f32.mrb[0].mxu0
    %v450 = vpop.f32.mrb[0].mxu0
    %v451 = vadd.f32 %v400, %v450
    %v452 = vpop.f32.mrb[0].mxu0
    %453 = vdwg.mxu0
    %v454 = vadd.f32 %v448, %v405
    %v455 = vadd.f32 %v451, %v406
    %vm456 = vcmp.gt.f32.partialorder %v454, 0.0
    %vm457 = vcmp.gt.f32.partialorder %v455, 0.0
    %v458 = vmul.f32 %v454, 0.02
    %v459 = vmul.f32 %v455, 0.02
    %v460 = vsel %vm456, %v454, %v458
    %v461 = vsel %vm457, %v455, %v459
    %v462 = vlaneseq
    %v463 = vshrl.u32 %v462, 7
    %v464 = vsub.s32 0, %v463
    %v465 = vrot.slane %v288, %v464
    %v466 = vadd.f32 %v460, %v465
    %v467 = vadd.f32 %v461, %v465
    %v468 = vpack.c.bf16 %v467, %v466
    %470 = vrot.lane.b32.xlu0 %v468, 16
    %v471 = vpop.permute.xlu0 %470
    %vm473 = vcmask 195712
    %474 = vst.msk [vmem:[#allocation2] sm:$0xff] %vm473, %v471
    %v475 = vld [vmem:[#allocation2] sm:$0xff]
    %v476 = vld [vmem:[%s4] sm:$0xf]
    %v477 = vld [vmem:[%s4 + $0x4] sm:$0xf]
    %v478 = vld [vmem:[%s4 + $0x8] sm:$0xf]
    %v482 = vunpack.c.l.b16 %v476
    %v483 = vunpack.c.l.b16 %v477
    %v484 = vunpack.c.l.b16 %v478
    %v485 = vpack.c.b16 %v483, %v482
    %v486 = vpack.c.b16 %v484, %v484
    %vm488 = vcmask 195584
    %v490 = vsel %vm488, %v475, 0
    %vm492 = vcmask 1043456
    %v494 = vsel %vm492, %v486, 0
    %496 = vmatprep.subr.bf16.mxu0 0
    %497 = vmatpush1.bf16.msra.mxu0 %v485
    %498 = vmatprep.subr.bf16.mxu0 0
    %499 = vmatpush1.bf16.msra.mxu0 %v494
    %500 = vmatprep.subr.bf16.mxu0 0
    %501 = vmatpush1.bf16.msra.mxu0 0
    %502 = vmatprep.subr.bf16.mxu0 0
    %503 = vmatpush1.bf16.msra.mxu0 0
    %504 = vmatprep.subr.bf16.mxu0 0
    %505 = vmatpush1.bf16.msra.mxu0 0
    %506 = vmatprep.subr.bf16.mxu0 0
    %507 = vmatpush1.bf16.msra.mxu0 0
    %508 = vmatprep.subr.bf16.mxu0 0
    %509 = vmatpush1.bf16.msra.mxu0 0
    %510 = vmatprep.subr.bf16.mxu0 0
    %511 = vmatpush1.bf16.msra.mxu0 0
    %512 = vmatprep.subr.bf16.mxu0 0
    %513 = vmatpush1.bf16.msra.mxu0 0
    %514 = vmatprep.subr.bf16.mxu0 0
    %515 = vmatpush1.bf16.msra.mxu0 0
    %516 = vmatprep.subr.bf16.mxu0 0
    %517 = vmatpush1.bf16.msra.mxu0 0
    %518 = vmatprep.subr.bf16.mxu0 0
    %519 = vmatpush1.bf16.msra.mxu0 0
    %520 = vmatprep.subr.bf16.mxu0 0
    %521 = vmatpush1.bf16.msra.mxu0 0
    %522 = vmatprep.subr.bf16.mxu0 0
    %523 = vmatpush1.bf16.msra.mxu0 0
    %524 = vmatprep.subr.bf16.mxu0 0
    %525 = vmatpush1.bf16.msra.mxu0 0
    %526 = vmatprep.subr.bf16.mxu0 0
    %527 = vmatpush1.bf16.msra.mxu0 0
    %528 = vmatprep.mubr.bf16.mxu0 0
    %529 = vmatmul.mubr.bf16.gmra.mrb[0].mxu0 %v490
    %v530 = vpop.f32.mrb[0].mxu0
    %v531 = vadd.f32 0.0, %v530
    %v532 = vpop.f32.mrb[0].mxu0
    %v533 = vpop.f32.mrb[0].mxu0
    %v534 = vadd.f32 0.0, %v533
    %v535 = vpop.f32.mrb[0].mxu0
    %536 = vdwg.mxu0
    %s537 = scalar_lea.vmem %s4, 12
    %v538 = vld [vmem:[%s537] sm:$0xf]
    %v539 = vld [vmem:[%s537 + $0x4] sm:$0xf]
    %v540 = vld [vmem:[%s537 + $0x8] sm:$0xf]
    %s541 = scalar_lea.vmem %s4, 24
    %v542 = vld [vmem:[%s541] sm:$0xf]
    %v543 = vld [vmem:[%s541 + $0x4] sm:$0xf]
    %v544 = vld [vmem:[%s541 + $0x8] sm:$0xf]
    %v548 = vunpack.c.l.b16 %v542
    %v549 = vunpack.c.l.b16 %v543
    %v550 = vunpack.c.l.b16 %v544
    %v551 = vpack.c.b16 %v549, %v548
    %v552 = vpack.c.b16 %v550, %v550
    %v555 = vsel %vm492, %v552, 0
    %557 = vmatprep.subr.bf16.mxu0 0
    %558 = vmatpush1.bf16.msra.mxu0 %v551
    %559 = vmatprep.subr.bf16.mxu0 0
    %560 = vmatpush1.bf16.msra.mxu0 %v555
    %561 = vmatprep.subr.bf16.mxu0 0
    %562 = vmatpush1.bf16.msra.mxu0 0
    %563 = vmatprep.subr.bf16.mxu0 0
    %564 = vmatpush1.bf16.msra.mxu0 0
    %565 = vmatprep.subr.bf16.mxu0 0
    %566 = vmatpush1.bf16.msra.mxu0 0
    %567 = vmatprep.subr.bf16.mxu0 0
    %568 = vmatpush1.bf16.msra.mxu0 0
    %569 = vmatprep.subr.bf16.mxu0 0
    %570 = vmatpush1.bf16.msra.mxu0 0
    %571 = vmatprep.subr.bf16.mxu0 0
    %572 = vmatpush1.bf16.msra.mxu0 0
    %573 = vmatprep.subr.bf16.mxu0 0
    %574 = vmatpush1.bf16.msra.mxu0 0
    %575 = vmatprep.subr.bf16.mxu0 0
    %576 = vmatpush1.bf16.msra.mxu0 0
    %577 = vmatprep.subr.bf16.mxu0 0
    %578 = vmatpush1.bf16.msra.mxu0 0
    %579 = vmatprep.subr.bf16.mxu0 0
    %580 = vmatpush1.bf16.msra.mxu0 0
    %581 = vmatprep.subr.bf16.mxu0 0
    %582 = vmatpush1.bf16.msra.mxu0 0
    %583 = vmatprep.subr.bf16.mxu0 0
    %584 = vmatpush1.bf16.msra.mxu0 0
    %585 = vmatprep.subr.bf16.mxu0 0
    %586 = vmatpush1.bf16.msra.mxu0 0
    %587 = vmatprep.subr.bf16.mxu0 0
    %588 = vmatpush1.bf16.msra.mxu0 0
    %589 = vmatprep.mubr.bf16.mxu0 0
    %590 = vmatmul.mubr.bf16.gmra.mrb[0].mxu0 %v490
    %v591 = vpop.f32.mrb[0].mxu0
    %v592 = vadd.f32 0.0, %v591
    %v593 = vpop.f32.mrb[0].mxu0
    %v594 = vpop.f32.mrb[0].mxu0
    %v595 = vadd.f32 0.0, %v594
    %v596 = vpop.f32.mrb[0].mxu0
    %597 = vdwg.mxu0
    %v598 = vrot.slane %v531, 7
    %v599 = vrot.slane %v534, 7
    %v600 = vsel %vm195, %v598, %v599
    %v601 = vsel %vm195, %v599, %v598
    %v602 = vsel %vm200, %v601, 0.0
    %v603 = vsel %vm201, %v600, 0.0
    %v604 = vrot.slane %v592, 1
    %v605 = vrot.slane %v595, 1
    %v606 = vsel %vm206, %v604, %v605
    %v607 = vsel %vm206, %v605, %v604
    %v608 = vsel %vm211, %v606, 0.0
    %v609 = vsel %vm212, %v607, 0.0
    %v613 = vunpack.c.l.b16 %v538
    %v614 = vunpack.c.l.b16 %v539
    %v615 = vunpack.c.l.b16 %v540
    %v616 = vpack.c.b16 %v614, %v613
    %v617 = vpack.c.b16 %v615, %v615
    %v620 = vsel %vm492, %v617, 0
    %622 = vmatprep.subr.bf16.mxu0 0
    %623 = vmatpush1.bf16.msra.mxu0 %v616
    %624 = vmatprep.subr.bf16.mxu0 0
    %625 = vmatpush1.bf16.msra.mxu0 %v620
    %626 = vmatprep.subr.bf16.mxu0 0
    %627 = vmatpush1.bf16.msra.mxu0 0
    %628 = vmatprep.subr.bf16.mxu0 0
    %629 = vmatpush1.bf16.msra.mxu0 0
    %630 = vmatprep.subr.bf16.mxu0 0
    %631 = vmatpush1.bf16.msra.mxu0 0
    %632 = vmatprep.subr.bf16.mxu0 0
    %633 = vmatpush1.bf16.msra.mxu0 0
    %634 = vmatprep.subr.bf16.mxu0 0
    %635 = vmatpush1.bf16.msra.mxu0 0
    %636 = vmatprep.subr.bf16.mxu0 0
    %637 = vmatpush1.bf16.msra.mxu0 0
    %638 = vmatprep.subr.bf16.mxu0 0
    %639 = vmatpush1.bf16.msra.mxu0 0
    %640 = vmatprep.subr.bf16.mxu0 0
    %641 = vmatpush1.bf16.msra.mxu0 0
    %642 = vmatprep.subr.bf16.mxu0 0
    %643 = vmatpush1.bf16.msra.mxu0 0
    %644 = vmatprep.subr.bf16.mxu0 0
    %645 = vmatpush1.bf16.msra.mxu0 0
    %646 = vmatprep.subr.bf16.mxu0 0
    %647 = vmatpush1.bf16.msra.mxu0 0
    %648 = vmatprep.subr.bf16.mxu0 0
    %649 = vmatpush1.bf16.msra.mxu0 0
    %650 = vmatprep.subr.bf16.mxu0 0
    %651 = vmatpush1.bf16.msra.mxu0 0
    %652 = vmatprep.subr.bf16.mxu0 0
    %653 = vmatpush1.bf16.msra.mxu0 0
    %654 = vmatprep.mubr.bf16.mxu0 0
    %655 = vmatmul.mubr.bf16.gmra.mrb[0].mxu0 %v490
    %v656 = vpop.f32.mrb[0].mxu0
    %v657 = vadd.f32 %v602, %v656
    %v658 = vpop.f32.mrb[0].mxu0
    %v659 = vpop.f32.mrb[0].mxu0
    %v660 = vadd.f32 %v603, %v659
    %v661 = vpop.f32.mrb[0].mxu0
    %662 = vdwg.mxu0
    %v663 = vadd.f32 %v657, %v608
    %v664 = vadd.f32 %v660, %v609
    %vm665 = vcmp.gt.f32.partialorder %v663, 0.0
    %vm666 = vcmp.gt.f32.partialorder %v664, 0.0
    %v667 = vmul.f32 %v663, 0.02
    %v668 = vmul.f32 %v664, 0.02
    %v669 = vsel %vm665, %v663, %v667
    %v670 = vsel %vm666, %v664, %v668
    %v671 = vlaneseq
    %v672 = vshrl.u32 %v671, 7
    %v673 = vsub.s32 1, %v672
    %v674 = vrot.slane %v288, %v673
    %v675 = vadd.f32 %v669, %v674
    %v676 = vadd.f32 %v670, %v674
    %v677 = vpack.c.bf16 %v676, %v675
    %679 = vrot.lane.b32.xlu0 %v677, 24
    %v680 = vpop.permute.xlu0 %679
    %vm682 = vcmask 261312
    %683 = vst.msk [vmem:[#allocation2] sm:$0xff] %vm682, %v680
    %v684 = vld [vmem:[#allocation2] sm:$0xff]
    %v685 = vld [vmem:[%s6] sm:$0xf]
    %v686 = vld [vmem:[%s6 + $0x4] sm:$0xf]
    %v687 = vld [vmem:[%s6 + $0x8] sm:$0xf]
    %v688 = vld [vmem:[%s6 + $0xc] sm:$0xf]
    %v693 = vunpack.c.l.b16 %v685
    %v694 = vunpack.c.l.b16 %v686
    %v695 = vunpack.c.l.b16 %v687
    %v696 = vunpack.c.l.b16 %v688
    %v697 = vpack.c.b16 %v694, %v693
    %v698 = vpack.c.b16 %v696, %v695
    %v702 = vsel %vm85, %v684, 0
    %704 = vmatprep.subr.bf16.mxu0 0
    %705 = vmatpush1.bf16.msra.mxu0 %v697
    %706 = vmatprep.subr.bf16.mxu0 0
    %707 = vmatpush1.bf16.msra.mxu0 %v698
    %708 = vmatprep.subr.bf16.mxu0 0
    %709 = vmatpush1.bf16.msra.mxu0 0
    %710 = vmatprep.subr.bf16.mxu0 0
    %711 = vmatpush1.bf16.msra.mxu0 0
    %712 = vmatprep.subr.bf16.mxu0 0
    %713 = vmatpush1.bf16.msra.mxu0 0
    %714 = vmatprep.subr.bf16.mxu0 0
    %715 = vmatpush1.bf16.msra.mxu0 0
    %716 = vmatprep.subr.bf16.mxu0 0
    %717 = vmatpush1.bf16.msra.mxu0 0
    %718 = vmatprep.subr.bf16.mxu0 0
    %719 = vmatpush1.bf16.msra.mxu0 0
    %720 = vmatprep.subr.bf16.mxu0 0
    %721 = vmatpush1.bf16.msra.mxu0 0
    %722 = vmatprep.subr.bf16.mxu0 0
    %723 = vmatpush1.bf16.msra.mxu0 0
    %724 = vmatprep.subr.bf16.mxu0 0
    %725 = vmatpush1.bf16.msra.mxu0 0
    %726 = vmatprep.subr.bf16.mxu0 0
    %727 = vmatpush1.bf16.msra.mxu0 0
    %728 = vmatprep.subr.bf16.mxu0 0
    %729 = vmatpush1.bf16.msra.mxu0 0
    %730 = vmatprep.subr.bf16.mxu0 0
    %731 = vmatpush1.bf16.msra.mxu0 0
    %732 = vmatprep.subr.bf16.mxu0 0
    %733 = vmatpush1.bf16.msra.mxu0 0
    %734 = vmatprep.subr.bf16.mxu0 0
    %735 = vmatpush1.bf16.msra.mxu0 0
    %736 = vmatprep.mubr.bf16.mxu0 0
    %737 = vmatmul.mubr.bf16.gmra.mrb[0].mxu0 %v702
    %v738 = vpop.f32.mrb[0].mxu0
    %v739 = vadd.f32 0.0, %v738
    %v740 = vpop.f32.mrb[0].mxu0
    %v741 = vpop.f32.mrb[0].mxu0
    %v742 = vadd.f32 0.0, %v741
    %v743 = vpop.f32.mrb[0].mxu0
    %744 = vdwg.mxu0
    %vm745 = vcmp.gt.f32.partialorder %v739, 0.0
    %vm746 = vcmp.gt.f32.partialorder %v742, 0.0
    %v747 = vmul.f32 %v739, 0.02
    %v748 = vmul.f32 %v742, 0.02
    %v749 = vsel %vm745, %v739, %v747
    %v750 = vsel %vm746, %v742, %v748
    %v753 = vcombine.high %v749, %v749
    %v755 = vunpack.c.l.s4 1983009808
    %v756 = vunpack.c.0.s8 %v755
    %v757 = vlaneseq
    %v758 = vshrl.u32 %v757, 7
    %v759 = vsub.s32 %v756, %v758
    %v760 = vrot.slane %v749, %v759
    %v762 = vunpack.c.l.s4 1983009808
    %v763 = vunpack.c.0.s8 %v762
    %v764 = vlaneseq
    %v765 = vshrl.u32 %v764, 7
    %v766 = vsub.s32 %v763, %v765
    %v767 = vrot.slane %v753, %v766
    %v768 = vcombine.high %v760, %v760
    %v769 = vcombine.high %v767, %v767
    %v770 = vcombine.high %v750, %v750
    %v772 = vunpack.c.l.s4 1983009808
    %v773 = vunpack.c.0.s8 %v772
    %v774 = vlaneseq
    %v775 = vshrl.u32 %v774, 7
    %v776 = vsub.s32 %v773, %v775
    %v777 = vrot.slane %v750, %v776
    %v779 = vunpack.c.l.s4 1983009808
    %v780 = vunpack.c.0.s8 %v779
    %v781 = vlaneseq
    %v782 = vshrl.u32 %v781, 7
    %v783 = vsub.s32 %v780, %v782
    %v784 = vrot.slane %v770, %v783
    %v785 = vcombine.high %v777, %v777
    %v786 = vcombine.high %v784, %v784
    %vm795 = vcmask 123904
    %v796 = vsel %vm795, %v760, 0.0
    %v797 = vrot.slane %v796, 4
    %v798 = vadd.f32 %v796, %v797
    %v799 = vrot.slane %v798, 2
    %v800 = vadd.f32 %v798, %v799
    %v801 = vrot.slane %v800, 1
    %v802 = vadd.f32 %v800, %v801
    %v803 = vsel %vm795, %v768, 0.0
    %v804 = vrot.slane %v803, 4
    %v805 = vadd.f32 %v803, %v804
    %v806 = vrot.slane %v805, 2
    %v807 = vadd.f32 %v805, %v806
    %v808 = vrot.slane %v807, 1
    %v809 = vadd.f32 %v807, %v808
    %v810 = vsel %vm795, %v767, 0.0
    %v811 = vrot.slane %v810, 4
    %v812 = vadd.f32 %v810, %v811
    %v813 = vrot.slane %v812, 2
    %v814 = vadd.f32 %v812, %v813
    %v815 = vrot.slane %v814, 1
    %v816 = vadd.f32 %v814, %v815
    %v817 = vsel %vm795, %v769, 0.0
    %v818 = vrot.slane %v817, 4
    %v819 = vadd.f32 %v817, %v818
    %v820 = vrot.slane %v819, 2
    %v821 = vadd.f32 %v819, %v820
    %v822 = vrot.slane %v821, 1
    %v823 = vadd.f32 %v821, %v822
    %v824 = vsel %vm795, %v777, 0.0
    %v825 = vrot.slane %v824, 4
    %v826 = vadd.f32 %v824, %v825
    %v827 = vrot.slane %v826, 2
    %v828 = vadd.f32 %v826, %v827
    %v829 = vrot.slane %v828, 1
    %v830 = vadd.f32 %v828, %v829
    %v831 = vsel %vm795, %v785, 0.0
    %v832 = vrot.slane %v831, 4
    %v833 = vadd.f32 %v831, %v832
    %v834 = vrot.slane %v833, 2
    %v835 = vadd.f32 %v833, %v834
    %v836 = vrot.slane %v835, 1
    %v837 = vadd.f32 %v835, %v836
    %v838 = vsel %vm795, %v784, 0.0
    %v839 = vrot.slane %v838, 4
    %v840 = vadd.f32 %v838, %v839
    %v841 = vrot.slane %v840, 2
    %v842 = vadd.f32 %v840, %v841
    %v843 = vrot.slane %v842, 1
    %v844 = vadd.f32 %v842, %v843
    %v845 = vsel %vm795, %v786, 0.0
    %v846 = vrot.slane %v845, 4
    %v847 = vadd.f32 %v845, %v846
    %v848 = vrot.slane %v847, 2
    %v849 = vadd.f32 %v847, %v848
    %v850 = vrot.slane %v849, 1
    %v851 = vadd.f32 %v849, %v850
    %v852 = vld [vmem:[%s7] sm:$0x1]
    %v854 = vlaneseq
    %v855 = vshrl.u32 %v854, 7
    %v856 = vsub.s32 0, %v855
    %v857 = vrot.slane %v852, %v856
    %v859 = vadd.f32 %v802, %v857
    %v860 = vadd.f32 %v809, %v857
    %v861 = vadd.f32 %v816, %v857
    %v862 = vadd.f32 %v823, %v857
    %v863 = vadd.f32 %v830, %v857
    %v864 = vadd.f32 %v837, %v857
    %v865 = vadd.f32 %v844, %v857
    %v866 = vadd.f32 %v851, %v857
    %v867 = vpack.c.bf16 %v859, %v859
    %v868 = vpack.c.bf16 %v860, %v860
    %v869 = vpack.c.bf16 %v861, %v861
    %v870 = vpack.c.bf16 %v862, %v862
    %v871 = vpack.c.bf16 %v863, %v863
    %v872 = vpack.c.bf16 %v864, %v864
    %v873 = vpack.c.bf16 %v865, %v865
    %v874 = vpack.c.bf16 %v866, %v866
    %v883 = vunpack.c.l.b16 %v867
    %v884 = vunpack.c.l.b16 %v868
    %v885 = vunpack.c.l.b16 %v869
    %v886 = vunpack.c.l.b16 %v870
    %v887 = vunpack.c.l.b16 %v871
    %v888 = vunpack.c.l.b16 %v872
    %v889 = vunpack.c.l.b16 %v873
    %v890 = vunpack.c.l.b16 %v874
    %v891 = vpack.c.b16 %v883, %v883
    %v892 = vpack.c.b16 %v884, %v884
    %v893 = vpack.c.b16 %v885, %v885
    %v894 = vpack.c.b16 %v886, %v886
    %v895 = vpack.c.b16 %v887, %v887
    %v896 = vpack.c.b16 %v888, %v888
    %v897 = vpack.c.b16 %v889, %v889
    %v898 = vpack.c.b16 %v890, %v890
    %v899 = vunpack.c.l.b16 %v891
    %v900 = vunpack.c.l.b16 %v892
    %v901 = vunpack.c.l.b16 %v893
    %v902 = vunpack.c.l.b16 %v894
    %v903 = vunpack.c.l.b16 %v895
    %v904 = vunpack.c.l.b16 %v896
    %v905 = vunpack.c.l.b16 %v897
    %v906 = vunpack.c.l.b16 %v898
    %v907 = vrot.slane %v900, 7
    %vm908 = vcmask 1041409
    %v909 = vsel %vm908, %v907, %v899
    %v910 = vrot.slane %v901, 6
    %vm911 = vcmask 1042434
    %v912 = vsel %vm911, %v910, %v909
    %v913 = vrot.slane %v902, 5
    %vm914 = vcmask 1043459
    %v915 = vsel %vm914, %v913, %v912
    %v916 = vrot.slane %v903, 4
    %vm917 = vcmask 1044484
    %v918 = vsel %vm917, %v916, %v915
    %v919 = vrot.slane %v904, 3
    %vm920 = vcmask 1045509
    %v921 = vsel %vm920, %v919, %v918
    %v922 = vrot.slane %v905, 2
    %vm923 = vcmask 1046534
    %v924 = vsel %vm923, %v922, %v921
    %v925 = vrot.slane %v906, 1
    %vm926 = vcmask 1047559
    %v927 = vsel %vm926, %v925, %v924
    %v928 = vpack.c.b16 %v927, %v927
    %vm930 = vcmask 125952
    %931 = vst.msk [vmem:[#allocation3] sm:$0xf] %vm930, %v928
    // Predicated region
    $region34: #{tpu_custom_call.1} parent=1 // pred_check
      _
    $region35: #{tpu_custom_call.1} parent=1 // pred_check_branch
      %933 = sbr.rel (0) target = $region37
    $region36: #{tpu_custom_call.1} parent=1 // pred_region
      %s935 = ssub.s32 64, 64
      %936 = vsyncadd [#allocation4], %s935
      %s938 = sshll.u32 [#allocation3], 4
      %s939 = int_to_ptr.vmem [resolvable:$true] %s938
      %941 = dma.vmem_to_hbm [thread:$0]  %s939, 64, %s8, [#allocation4]
    $region37: #{tpu_custom_call.1} parent=1 // pred_fallthru
      _
    // Predicated region
    $region38: #{tpu_custom_call.1} parent=1 // pred_check
      _
    $region39: #{tpu_custom_call.1} parent=1 // pred_check_branch
      %943 = sbr.rel (0) target = $region41
    $region40: #{tpu_custom_call.1} parent=1 // pred_region
      %944 = dma.done [#allocation4], 64
    $region41: #{tpu_custom_call.1} parent=1 // pred_fallthru
      _
    %945 = vsyncpa [#allocation4], 1

</llo_original>
